<compile_context>
chip_gen: v5e
topology: v5e:2x2
jax: 0.10.0
libtpu: 0.0.40
codegen_flags: <defaults>
</compile_context>

<pallas_src>
import functools

import jax
import jax.numpy as jnp
from jax.experimental import pallas as pl
from jax.experimental.pallas import tpu as pltpu


def _round_up(x: int, m: int) -> int:
    return -(-x // m) * m


def _tensorcores_per_device() -> int:
    """Heuristic TC count: v7x (and megacore parts) expose 2 TensorCores."""
    try:
        kind = jax.devices()[0].device_kind.lower()
    except Exception:
        return 1
    if "v7" in kind or "v4" in kind or "v5p" in kind:
        return 2
    return 1


def _choose_layout(batch: int, n: int, esize: int, vmem_budget_bytes: int,
                   num_cores: int):
    """Pick (f, rows, ncols, tile_cols, total_tiles, num_splits, steps)."""
    # Largest sublane-packing factor that divides N (free row-major reshape),
    # keeping at least one full lane group per row when possible.
    f = 1
    for cand in (8, 4, 2):
        if n % cand == 0 and n // cand >= 128:
            f = cand
            break
    rows = f * batch
    ncols = n // f
    max_cols = _round_up(ncols, 128)

    # VMEM footprint per column-tile: 2 inputs x 2 pipeline buffers (native
    # dtype) + 1 full-width f32 accumulator  ->  rows*cols*(4*esize + 4) bytes.
    elems = vmem_budget_bytes // (4 * esize + 4)
    budget_cols = max(128, (elems // max(rows, 1)) // 128 * 128)
    # >=512-col floor keeps per-row DMA chunks big and per-step count low.
    tile_cols = min(max(budget_cols, 512), max_cols)

    total_tiles = -(-ncols // tile_cols)
    num_splits = 2 if (num_cores >= 2 and total_tiles >= 2) else 1
    steps = -(-total_tiles // num_splits)
    return f, rows, ncols, tile_cols, total_tiles, num_splits, steps


def _psnr_partial_kernel(pred_ref, gt_ref, out_ref, acc_ref, *,
                         steps: int, tile_cols: int, ncols: int,
                         needs_mask: bool):
    """Accumulate per-row sums of squared differences over the column tiles."""
    k = pl.program_id(1)  # reduction axis (innermost grid axis)

    @pl.when(k == 0)
    def _():
        acc_ref[...] = jnp.zeros_like(acc_ref)

    # Hot path: elementwise VPU work only, in the inputs' native dtype.
    d = pred_ref[...].astype(jnp.float32) - gt_ref[...].astype(jnp.float32)
    dd = d * d

    if needs_mask:
        # Ragged last tile (and the clamped duplicate tile on an odd split):
        # zero every lane whose *intended* global column is out of bounds.
        start = (pl.program_id(0) * steps + k) * tile_cols
        col = jax.lax.broadcasted_iota(jnp.int32, dd.shape, 1) + start
        dd = jnp.where(col < ncols, dd, 0.0)

    acc_ref[...] += dd

    @pl.when(k == pl.num_programs(1) - 1)
    def _():
        # Single cross-lane (XLU) reduction per split, off the hot path.
        out_ref[0] = jnp.sum(acc_ref[...], axis=1, keepdims=True)


@functools.partial(jax.jit, static_argnames=("subname",))
def psnr_pallas(pred_img, gt_img, subname: str = ""):
    B, C, H, W = pred_img.shape
    N = C * H * W
    hw = H * W
    esize = jnp.dtype(pred_img.dtype).itemsize
    num_cores = _tensorcores_per_device()

    f, rows, ncols, tile_cols, total_tiles, num_splits, steps = _choose_layout(
        B, N, esize, vmem_budget_bytes=24 << 20, num_cores=num_cores)

    # Free row-major reshapes (no HBM copy, no pad, no dtype cast).
    pred2 = pred_img.reshape(rows, ncols)
    gt2 = gt_img.reshape(rows, ncols)

    needs_mask = (ncols % tile_cols != 0) or (num_splits * steps != total_tiles)

    # Clamp the tile index so no DMA block is ever fully out of bounds; the
    # duplicated tile (odd tile count split across 2 cores) is zeroed in-kernel.
    def in_index(p, k):
        return (0, jnp.minimum(p * steps + k, total_tiles - 1))

    in_spec = pl.BlockSpec((rows, tile_cols), in_index)
    out_spec = pl.BlockSpec((1, rows, 1), lambda p, k: (p, 0, 0))

    kernel = functools.partial(
        _psnr_partial_kernel,
        steps=steps, tile_cols=tile_cols, ncols=ncols, needs_mask=needs_mask)

    partial_sums = pl.pallas_call(
        kernel,
        out_shape=jax.ShapeDtypeStruct((num_splits, rows, 1), jnp.float32),
        grid_spec=pltpu.PrefetchScalarGridSpec(
            num_scalar_prefetch=0,
            grid=(num_splits, steps),
            in_specs=[in_spec, in_spec],
            out_specs=out_spec,
            scratch_shapes=[pltpu.VMEM((rows, tile_cols), jnp.float32)],
        ),
        compiler_params=pltpu.CompilerParams(
            dimension_semantics=("parallel", "arbitrary"),
            vmem_limit_bytes=32 << 20,
        ),
        cost_estimate=pl.CostEstimate(
            flops=3 * rows * ncols,
            transcendentals=0,
            bytes_accessed=2 * esize * rows * ncols + 4 * num_splits * rows,
        ),
    )(pred2, gt2)

    # O(B) epilogue in plain JAX: combine splits/rows, then mse -> psnr -> mean.
    row_sums = partial_sums.sum(axis=0)[:, 0]            # (rows,)
    batch_sums = row_sums.reshape(B, f).sum(axis=1)      # (B,)
    mse = batch_sums / jnp.float32(hw)
    psnr = 10.0 * jnp.log10(1.0 / mse)
    return {"psnr" + subname: psnr.mean()}


def psnr_reference(pred_img, gt_img, subname: str = ""):
    B = pred_img.shape[0]
    diff2 = (pred_img.astype(jnp.float32) - gt_img.astype(jnp.float32)) ** 2
    mse_err = diff2.sum(axis=1).reshape(B, -1).mean(axis=1)
    psnr = 10.0 * jnp.log10(1.0 / mse_err)
    return {"psnr" + subname: psnr.mean()}


if __name__ == "__main__":
    key = jax.random.PRNGKey(0)
    k1, k2, k3, k4 = jax.random.split(key, 4)

    # Small image-like inputs: (B, C, H, W)
    B, C, H, W = 2, 4, 16, 16
    pred = jax.random.uniform(k1, (B, C, H, W), dtype=jnp.float32)
    gt = jax.random.uniform(k2, (B, C, H, W), dtype=jnp.float32)

    out = psnr_pallas(pred, gt)
    val = jax.block_until_ready(out["psnr"])
    ref = psnr_reference(pred, gt)["psnr"]
    assert jnp.allclose(val, ref, rtol=1e-5, atol=1e-5), (val, ref)

    # Second shape: flattened size not a multiple of 8*128 -> exercises the
    # in-kernel masking path (no pad, ragged last tile).
    B2, C2, H2, W2 = 2, 3, 17, 17
    pred_b = jax.random.uniform(k3, (B2, C2, H2, W2), dtype=jnp.float32)
    gt_b = jax.random.uniform(k4, (B2, C2, H2, W2), dtype=jnp.float32)
    out_b = psnr_pallas(pred_b, gt_b)
    val_b = jax.block_until_ready(out_b["psnr"])
    ref_b = psnr_reference(pred_b, gt_b)["psnr"]
    assert jnp.allclose(val_b, ref_b, rtol=1e-5, atol=1e-5), (val_b, ref_b)

    # Native-dtype streaming path (bf16 inputs, no wrapper cast).
    pred_c = pred.astype(jnp.bfloat16)
    gt_c = gt.astype(jnp.bfloat16)
    out_c = psnr_pallas(pred_c, gt_c)
    val_c = jax.block_until_ready(out_c["psnr"])
    ref_c = psnr_reference(pred_c, gt_c)["psnr"]
    assert jnp.allclose(val_c, ref_c, rtol=1e-3, atol=1e-3), (val_c, ref_c)

    print("KERNEL_OK")
</pallas_src>

<mosaic_0001>
module attributes {stable_mosaic.version = 11 : i64} {
  func.func @_psnr_partial_kernel(%arg0: i32, %arg1: i32, %arg2: memref<16x128xf32, #tpu.memory_space<vmem>>, %arg3: memref<16x128xf32, #tpu.memory_space<vmem>>, %arg4: memref<1x16x1xf32, #tpu.memory_space<vmem>>, %arg5: memref<16x128xf32, #tpu.memory_space<vmem>>) attributes {dimension_semantics = [#tpu.dimension_semantics<parallel>, #tpu.dimension_semantics<arbitrary>], iteration_bounds = array<i64: 1, 1>, scalar_prefetch = 0 : i64, scratch_operands = 1 : i64, tpu.core_type = #tpu.core_type<tc>, window_params = [{transform_indices = @transform_0, window_bounds = array<i64: 16, 128>}, {transform_indices = @transform_1, window_bounds = array<i64: 16, 128>}, {transform_indices = @transform_2, window_bounds = array<i64: 1, 16, 1>}]} {
    %c0_i32 = arith.constant 0 : i32
    %0 = arith.cmpi eq, %arg1, %c0_i32 : i32
    %1 = arith.extui %0 : i1 to i32
    %c0_i32_0 = arith.constant 0 : i32
    %2 = arith.cmpi ne, %1, %c0_i32_0 : i32
    scf.if %2 {
      %cst = arith.constant 0.000000e+00 : f32
      %13 = vector.broadcast %cst : f32 to vector<16x128xf32>
      %c0_10 = arith.constant 0 : index
      %c0_11 = arith.constant 0 : index
      %14 = vector.load %arg5[%c0_10, %c0_11] : memref<16x128xf32, #tpu.memory_space<vmem>>, vector<16x128xf32>
      tpu.vector_store %arg5[%c0_10, %c0_11], %13 {strides = array<i32>} : memref<16x128xf32, #tpu.memory_space<vmem>>, vector<16x128xf32>,
    } else {
    }
    %c0 = arith.constant 0 : index
    %c0_1 = arith.constant 0 : index
    %3 = vector.load %arg2[%c0, %c0_1] : memref<16x128xf32, #tpu.memory_space<vmem>>, vector<16x128xf32>
    %c0_2 = arith.constant 0 : index
    %c0_3 = arith.constant 0 : index
    %4 = vector.load %arg3[%c0_2, %c0_3] : memref<16x128xf32, #tpu.memory_space<vmem>>, vector<16x128xf32>
    %5 = arith.subf %3, %4 : vector<16x128xf32>
    %6 = arith.mulf %5, %5 : vector<16x128xf32>
    %c0_4 = arith.constant 0 : index
    %c0_5 = arith.constant 0 : index
    %7 = vector.load %arg5[%c0_4, %c0_5] : memref<16x128xf32, #tpu.memory_space<vmem>>, vector<16x128xf32>
    %8 = arith.addf %7, %6 : vector<16x128xf32>
    %c0_6 = arith.constant 0 : index
    %c0_7 = arith.constant 0 : index
    %9 = vector.load %arg5[%c0_6, %c0_7] : memref<16x128xf32, #tpu.memory_space<vmem>>, vector<16x128xf32>
    tpu.vector_store %arg5[%c0_6, %c0_7], %8 {strides = array<i32>} : memref<16x128xf32, #tpu.memory_space<vmem>>, vector<16x128xf32>,
    %c0_i32_8 = arith.constant 0 : i32
    %10 = arith.cmpi eq, %arg1, %c0_i32_8 : i32
    %11 = arith.extui %10 : i1 to i32
    %c0_i32_9 = arith.constant 0 : i32
    %12 = arith.cmpi ne, %11, %c0_i32_9 : i32
    scf.if %12 {
      %c0_10 = arith.constant 0 : index
      %c0_11 = arith.constant 0 : index
      %13 = vector.load %arg5[%c0_10, %c0_11] : memref<16x128xf32, #tpu.memory_space<vmem>>, vector<16x128xf32>
      %cst = arith.constant dense<0.000000e+00> : vector<16xf32>
      %14 = vector.multi_reduction <add>, %13, %cst [1] : vector<16x128xf32> to vector<16xf32>
      %15 = vector.shape_cast %14 : vector<16xf32> to vector<16x1xf32>
      %c0_12 = arith.constant 0 : index
      %c0_13 = arith.constant 0 : index
      %c0_14 = arith.constant 0 : index
      %16 = vector.load %arg4[%c0_12, %c0_13, %c0_14] : memref<1x16x1xf32, #tpu.memory_space<vmem>>, vector<1x16x1xf32>
      %17 = vector.shape_cast %16 : vector<1x16x1xf32> to vector<16x1xf32>
      %18 = vector.shape_cast %15 : vector<16x1xf32> to vector<1x16x1xf32>
      tpu.vector_store %arg4[%c0_12, %c0_13, %c0_14], %18 {strides = array<i32>} : memref<1x16x1xf32, #tpu.memory_space<vmem>>, vector<1x16x1xf32>,
    } else {
    }
    return
  }
  func.func @transform_0(%arg0: i32, %arg1: i32) -> (i32, i32) {
    %c1_i32 = arith.constant 1 : i32
    %0 = arith.muli %arg0, %c1_i32 : i32
    %1 = arith.addi %0, %arg1 : i32
    %c0_i32 = arith.constant 0 : i32
    %2 = arith.minsi %1, %c0_i32 : i32
    %c0_i32_0 = arith.constant 0 : i32
    %c0_i32_1 = arith.constant 0 : i32
    return %c0_i32_0, %2 : i32, i32
  }
  func.func @transform_1(%arg0: i32, %arg1: i32) -> (i32, i32) {
    %c1_i32 = arith.constant 1 : i32
    %0 = arith.muli %arg0, %c1_i32 : i32
    %1 = arith.addi %0, %arg1 : i32
    %c0_i32 = arith.constant 0 : i32
    %2 = arith.minsi %1, %c0_i32 : i32
    %c0_i32_0 = arith.constant 0 : i32
    %c0_i32_1 = arith.constant 0 : i32
    return %c0_i32_0, %2 : i32, i32
  }
  func.func @transform_2(%arg0: i32, %arg1: i32) -> (i32, i32, i32) {
    %c0_i32 = arith.constant 0 : i32
    %c0_i32_0 = arith.constant 0 : i32
    %c0_i32_1 = arith.constant 0 : i32
    return %arg0, %c0_i32, %c0_i32_0 : i32, i32, i32
  }
}

</mosaic_0001>

<llo_original>
// kernel: squeeze.1
$region0: #{squeeze.1}
  %s0 = inlined_call_operand.vmem [shape: f32[16], index: 0, kind: input, shape index: {}]
  %s1 = inlined_call_operand.vmem [shape: f32[2,8], index: 1, kind: output, shape index: {}]
  $region1: #{squeeze.1} parent=0
    #allocation0 [shape = 'u8[4096]{0}', space=vmem, size = 0x1000, scoped, tag = 'scoped mem for output reshape']
    #allocation1 [shape = 'u8[4096]{0}', space=vmem, size = 0x1000, scoped, tag = 'scoped mem for input reshape']
    %s3 = ssub.s32 2, 1
    %v4 = vld [vmem:[%s0] sm:%s3]
    %5 = vst [vmem:[#allocation1] sm:%s3] %v4
    %v6 = vld [vmem:[#allocation1] sm:$0x1]
    %vm7 = vcmask 64512
    %8 = vst.msk [vmem:[#allocation0] sm:$0x1] %vm7, %v6
    %v9 = vld [vmem:[#allocation1] sm:$0x1]
    %10 = vrot.lane.b32.xlu0 %v9, 120
    %v11 = vpop.permute.xlu0 %10
    %vm12 = vcmask 64512
    %s13 = scalar_lea.vmem [#allocation0], 1
    %14 = vst.msk [vmem:[%s13] sm:$0x1] %vm12, %v11
    %s16 = ssub.s32 4, 1
    %v17 = vld [vmem:[#allocation0] sm:%s16]
    %s19 = ssub.s32 4, 1
    %20 = vst [vmem:[%s1] sm:%s19] %v17

// kernel: psnr_pallas.1
$region0: #{psnr_pallas.1}
  #allocation0 [shape = 'u32[]', space=smem, size = 0x4, offset = 0x4, fixed_abs, tag = 'smem constant byte address 0x4 - core index']
  #allocation1 [shape = 'u32[72,128]{1,0:T(1,128)}', space=vmem, size = 0x9000, scoped, tag = 'internal scratch']
  #allocation2 [shape = 'f32[16,128]{1,0:T(8,128)}', space=vmem, size = 0x2000, scoped, tag = 'scratch operand']
  %s0 = inlined_call_operand.vmem [shape: f32[16,128], index: 0, kind: input, shape index: {}]
  %s1 = inlined_call_operand.vmem [shape: f32[16,128], index: 1, kind: input, shape index: {}]
  %s2 = inlined_call_operand.vmem [shape: f32[1,16,1], index: 2, kind: output, shape index: {}]
  %s3 = sld [smem:[#allocation0]]
  $region26: #{psnr_pallas.1} parent=0
    _
  %s5 = ssub.s32 1, %s3
  %s6 = scalar_select 0, %s5, %s3
  // Predicated region
  $region2: #{psnr_pallas.1} parent=0 // pred_check
    _
  $region3: #{psnr_pallas.1} parent=0 // pred_check_branch
    %8 = sbr.rel (0) target = $region5
  $region4: #{psnr_pallas.1} parent=0 // pred_region
    %s9 = sadd.s32 0, 0
    %p10 = scmp.lt.s32.totalorder %s9, 0
    %s11 = scalar_select %p10, %s9, 0
    %p12 = scmp.lt.s32.totalorder %s11, 0
    %s13 = scalar_select %p12, %s11, 0
    %s14 = smul.addr %s13, 8
    %s15 = scalar_lea.vmem %s0, %s14
    %s16 = sadd.s32 0, 0
    %p17 = scmp.lt.s32.totalorder %s16, 0
    %s18 = scalar_select %p17, %s16, 0
  $region5: #{psnr_pallas.1} parent=0 // pred_fallthru
    _
  // Predicated region
  $region6: #{psnr_pallas.1} parent=0 // pred_check
    _
  $region7: #{psnr_pallas.1} parent=0 // pred_check_branch
    %20 = sbr.rel (0) target = $region9
  $region8: #{psnr_pallas.1} parent=0 // pred_region
    %s21 = sadd.s32 0, 0
    %p22 = scmp.lt.s32.totalorder %s21, 0
    %s23 = scalar_select %p22, %s21, 0
    %p24 = scmp.lt.s32.totalorder %s23, 0
    %s25 = scalar_select %p24, %s23, 0
    %s26 = smul.addr %s25, 8
    %s27 = scalar_lea.vmem %s1, %s26
    %s28 = sadd.s32 0, 0
    %p29 = scmp.lt.s32.totalorder %s28, 0
    %s30 = scalar_select %p29, %s28, 0
  $region9: #{psnr_pallas.1} parent=0 // pred_fallthru
    _
  %s31 = sadd.s32 0, 0
  %p32 = scmp.lt.s32.totalorder %s31, 0
  %s33 = scalar_select %p32, %s31, 0
  %p34 = scmp.lt.s32.totalorder %s33, 0
  %s35 = scalar_select %p34, %s33, 0
  %s36 = smul.addr %s35, 8
  %s37 = scalar_lea.vmem %s0, %s36
  %s38 = sadd.s32 0, 0
  %p39 = scmp.lt.s32.totalorder %s38, 0
  %s40 = scalar_select %p39, %s38, 0
  %p41 = scmp.lt.s32.totalorder %s40, 0
  %s42 = scalar_select %p41, %s40, 0
  %s43 = smul.addr %s42, 8
  %s44 = scalar_lea.vmem %s1, %s43
  %s45 = sadd.s32 0, 0
  %p46 = scmp.lt.s32.totalorder %s45, 0
  %s47 = scalar_select %p46, %s45, 0
  %p48 = scmp.lt.s32.totalorder %s47, 0
  %s49 = scalar_select %p48, %s47, 0
  %s50 = smul.addr %s49, 8
  %s51 = scalar_lea.vmem %s0, %s50
  %s52 = sadd.s32 0, 0
  %p53 = scmp.lt.s32.totalorder %s52, 0
  %s54 = scalar_select %p53, %s52, 0
  %s55 = sadd.s32 0, 0
  %p56 = scmp.lt.s32.totalorder %s55, 0
  %s57 = scalar_select %p56, %s55, 0
  %p58 = scmp.lt.s32.totalorder %s57, 0
  %s59 = scalar_select %p58, %s57, 0
  %s60 = smul.addr %s59, 8
  %s61 = scalar_lea.vmem %s1, %s60
  %s62 = sadd.s32 0, 0
  %p63 = scmp.lt.s32.totalorder %s62, 0
  %s64 = scalar_select %p63, %s62, 0
  %p65 = scmp.eq.s32.totalorder 0, 0
  // Predicated region
  $region10: #{psnr_pallas.1} parent=0 // pred_check
    %p66 = pneg %p65
  $region11: #{psnr_pallas.1} parent=0 // pred_check_branch
    %68 = sbr.rel (%p66) target = $region13
  $region12: #{psnr_pallas.1} parent=0 // pred_region
    %69 = vst [vmem:[#allocation2] sm:$0xff] 0.0
    %70 = vst [vmem:[#allocation2 + $0x8] sm:$0xff] 0.0
  $region13: #{psnr_pallas.1} parent=0 // pred_fallthru
    _
  %v71 = vld [vmem:[%s51] sm:$0xff]
  %v72 = vld [vmem:[%s51 + $0x8] sm:$0xff]
  %v73 = vld [vmem:[%s61] sm:$0xff]
  %v74 = vld [vmem:[%s61 + $0x8] sm:$0xff]
  %v75 = vsub.f32 %v71, %v73
  %v76 = vsub.f32 %v72, %v74
  %v77 = vmul.f32 %v75, %v75
  %v78 = vmul.f32 %v76, %v76
  %v79 = vld [vmem:[#allocation2] sm:$0xff]
  %v80 = vld [vmem:[#allocation2 + $0x8] sm:$0xff]
  %v81 = vadd.f32 %v79, %v77
  %v82 = vadd.f32 %v80, %v78
  %83 = vst [vmem:[#allocation2] sm:$0xff] %v81
  %84 = vst [vmem:[#allocation2 + $0x8] sm:$0xff] %v82
  // Predicated region
  $region14: #{psnr_pallas.1} parent=0 // pred_check
    %p85 = pneg %p65
  $region15: #{psnr_pallas.1} parent=0 // pred_check_branch
    %87 = sbr.rel (%p85) target = $region17
  $region16: #{psnr_pallas.1} parent=0 // pred_region
    %v88 = vld [vmem:[#allocation2] sm:$0xff]
    %v89 = vld [vmem:[#allocation2 + $0x8] sm:$0xff]
    %90 = vadd.xlane.f32.xlu0 %v88
    %v91 = vpop.xlane.xlu0 %90
    %92 = vadd.xlane.f32.xlu0 %v89
    %v93 = vpop.xlane.xlu0 %92
    %vm94 = vcmask 7168
    %95 = vst.msk [vmem:[%s2] sm:$0xff] %vm94, %v91
    %96 = vst.msk [vmem:[%s2 + $0x8] sm:$0xff] %vm94, %v93
  $region17: #{psnr_pallas.1} parent=0 // pred_fallthru
    _
  // Predicated region
  $region18: #{psnr_pallas.1} parent=0 // pred_check
    _
  $region19: #{psnr_pallas.1} parent=0 // pred_check_branch
    %98 = sbr.rel (0) target = $region21
  $region20: #{psnr_pallas.1} parent=0 // pred_region
    _
  $region21: #{psnr_pallas.1} parent=0 // pred_fallthru
    _
  // Predicated region
  $region22: #{psnr_pallas.1} parent=0 // pred_check
    _
  $region23: #{psnr_pallas.1} parent=0 // pred_check_branch
    %100 = sbr.rel (0) target = $region25
  $region24: #{psnr_pallas.1} parent=0 // pred_region
    _
  $region25: #{psnr_pallas.1} parent=0 // pred_fallthru
    _

</llo_original>
